<compile_context>
chip_gen: v6e
topology: v6e:2x2x1
jax: 0.10.0
libtpu: 0.0.40
codegen_flags: <defaults>
</compile_context>

<pallas_src>
import functools

import numpy as np

import jax
import jax.numpy as jnp
from jax.experimental import pallas as pl
from jax.experimental.pallas import tpu as pltpu


# ---------------------------------------------------------------------------
# Fused kernel: conv3x3(pad=1) + ReLU + flatten + Linear, all in VMEM.
# ---------------------------------------------------------------------------
def _fused_fc_out_kernel(x_ref, wband_ref, bslab_ref, fcw2_ref, mask_ref,
                         rmat_ref, smat_ref, fcb_ref, o_ref, *, n, h):
    # ---- fea: 3x3 conv (pad=1) + ReLU ----
    # For each sample, accumulate the three kh-shifted row windows of the padded
    # input (held in VMEM) against the banded conv weight.  Result rows are
    # (n, h); columns are (w, c_out) -> lane-dense (n*h, w*f) slab, HWC order.
    per_sample = []
    for ni in range(n):                                   # tiny static batch, unrolled
        xv = x_ref[ni]                                    # (H+2, (W+2)*C)
        a = jnp.dot(xv[0:h, :], wband_ref[0],
                    preferred_element_type=jnp.float32)   # (h, w*f)
        for kh in range(1, 3):
            a = a + jnp.dot(xv[kh:kh + h, :], wband_ref[kh],
                            preferred_element_type=jnp.float32)
        per_sample.append(a)
    acc = jnp.concatenate(per_sample, axis=0)             # (n*h, w*f)
    feat = jnp.maximum(acc + bslab_ref[...], 0.0)         # bias + ReLU, stays in VMEM

    # ---- flatten + cla: Linear over the (h, w, c_out) features ----
    # out[n, j] = sum_h feat[n*h + h', :] @ fcw2[:, h'*nc:(h'+1)*nc]
    # p selects all h-blocks, mask keeps the block matching each row's own h,
    # rmat sums the column groups, smat sums the h rows within each sample.
    p = jnp.dot(feat, fcw2_ref[...], preferred_element_type=jnp.float32)      # (n*h, h*nc)
    q = jnp.dot(p * mask_ref[...], rmat_ref[...],
                preferred_element_type=jnp.float32)                           # (n*h, nc)
    out = jnp.dot(smat_ref[...], q, preferred_element_type=jnp.float32)       # (n, nc)
    out = out + fcb_ref[...]
    o_ref[...] = out.astype(o_ref.dtype)


# ---------------------------------------------------------------------------
# One-time host-side prepare: PyTorch-layout weights -> kernel operands.
# (This is checkpoint-import glue; it runs once, not on the hot path.)
# ---------------------------------------------------------------------------
def prepare_kernel_operands(params, *, batch, height, width):
    conv_w = np.asarray(params["conv_w"], np.float32)    # (F, C, 3, 3)  torch Conv2d.weight
    conv_b = np.asarray(params["conv_b"], np.float32)    # (F,)
    fc_w = np.asarray(params["fc_w"], np.float32)        # (NC, F*H*W)   torch Linear.weight
    fc_b = np.asarray(params["fc_b"], np.float32)        # (NC,)

    n, h, w = batch, height, width
    f, c = conv_w.shape[0], conv_w.shape[1]
    nc = fc_w.shape[0]
    wp = w + 2
    wc, wf = wp * c, w * f

    # Conv weight in (kh, kw, c, f) order.
    w_khkwcf = conv_w.transpose(2, 3, 1, 0)              # (3, 3, C, F)

    # Banded conv weight: for each kh, a ((W+2)*C, W*F) matrix so the conv is
    # three accumulating matmuls over kh-shifted row windows of the padded input.
    w_band = np.zeros((3, wc, wf), np.float32)
    for kwi in range(3):
        for wi in range(w):
            w_band[:, (wi + kwi) * c:(wi + kwi + 1) * c, wi * f:(wi + 1) * f] = \
                w_khkwcf[:, kwi, :, :]

    # Conv bias tiled over w so it broadcasts on the (n*h, w*f) slab.
    b_slab = np.tile(conv_b, w).reshape(1, wf).astype(np.float32)

    # Classifier weight pre-permuted to the kernel's HWC flatten order:
    # fcw2[w*F+f, h*NC+j] = fc_w[j, f*H*W + h*W + w]  (torch NCHW flatten order).
    fc_w_fhwj = fc_w.T.reshape(f, h, w, nc)              # [f, h, w, j]
    fcw2 = fc_w_fhwj.transpose(2, 0, 1, 3).reshape(wf, h * nc).astype(np.float32)

    # Constant selection / reduction matrices for the in-kernel flatten+Linear.
    mask = np.tile(np.kron(np.eye(h, dtype=np.float32),
                           np.ones((1, nc), np.float32)), (n, 1))     # (n*h, h*nc)
    rmat = np.tile(np.eye(nc, dtype=np.float32), (h, 1))              # (h*nc, nc)
    smat = np.kron(np.eye(n, dtype=np.float32),
                   np.ones((1, h), np.float32))                       # (n, n*h)
    fcb2 = fc_b.reshape(1, nc).astype(np.float32)

    return {
        "w_band": jnp.asarray(w_band),
        "b_slab": jnp.asarray(b_slab),
        "fcw2": jnp.asarray(fcw2),
        "mask": jnp.asarray(mask),
        "rmat": jnp.asarray(rmat),
        "smat": jnp.asarray(smat),
        "fcb2": jnp.asarray(fcb2),
    }


# ---------------------------------------------------------------------------
# fc_out forward:  x -> fea(x) -> flatten -> cla(x), one fused Pallas call.
# ---------------------------------------------------------------------------
def fc_out_forward(x_nchw, kops):
    n, c, h, w = x_nchw.shape
    hp, wp = h + 2, w + 2
    wc = wp * c
    nc = kops["fcb2"].shape[-1]

    # Cheap host-side packing (~10 KiB): NCHW -> padded NHWC -> (N, H+2, (W+2)*C).
    x_nhwc = jnp.transpose(x_nchw, (0, 2, 3, 1))
    x_pad = jnp.pad(x_nhwc, ((0, 0), (1, 1), (1, 1), (0, 0)))
    x3 = x_pad.reshape(n, hp, wc).astype(jnp.float32)

    vmem = pl.BlockSpec(memory_space=pltpu.MemorySpace.VMEM)
    kernel = functools.partial(_fused_fc_out_kernel, n=n, h=h)
    out = pl.pallas_call(
        kernel,
        out_shape=jax.ShapeDtypeStruct((n, nc), jnp.float32),
        in_specs=[vmem] * 8,
        out_specs=vmem,
    )(x3, kops["w_band"], kops["b_slab"], kops["fcw2"], kops["mask"],
      kops["rmat"], kops["smat"], kops["fcb2"])
    return out


# ---------------------------------------------------------------------------
# Parameters in PyTorch layouts + a pure-numpy reference of the torch forward.
# ---------------------------------------------------------------------------
def init_params(key, *, c_in, c_out, h, w, num_classes):
    k1, k2, k3, k4 = jax.random.split(key, 4)
    conv_w = jax.random.normal(k1, (c_out, c_in, 3, 3), jnp.float32) * 0.05
    conv_b = jax.random.normal(k2, (c_out,), jnp.float32) * 0.05
    fc_w = jax.random.normal(k3, (num_classes, c_out * h * w), jnp.float32) * 0.02
    fc_b = jax.random.normal(k4, (num_classes,), jnp.float32) * 0.02
    return {"conv_w": conv_w, "conv_b": conv_b, "fc_w": fc_w, "fc_b": fc_b}


def reference_forward_np(x_nchw, params):
    x = np.asarray(x_nchw, np.float32)
    conv_w = np.asarray(params["conv_w"], np.float32)
    conv_b = np.asarray(params["conv_b"], np.float32)
    fc_w = np.asarray(params["fc_w"], np.float32)
    fc_b = np.asarray(params["fc_b"], np.float32)
    n, c, h, w = x.shape
    f = conv_w.shape[0]
    xp = np.pad(x.transpose(0, 2, 3, 1), ((0, 0), (1, 1), (1, 1), (0, 0)))
    w_col = conv_w.transpose(2, 3, 1, 0).reshape(9 * c, f)
    cols = np.stack([xp[:, kh:kh + h, kw:kw + w, :]
                     for kh in range(3) for kw in range(3)],
                    axis=3).reshape(n * h * w, 9 * c)
    feat = np.maximum(cols @ w_col + conv_b, 0.0).reshape(n, h, w, f)
    flat = feat.transpose(0, 3, 1, 2).reshape(n, f * h * w)   # torch x.view(n, -1) on NCHW
    return flat @ fc_w.T + fc_b


if __name__ == "__main__":
    key = jax.random.PRNGKey(0)
    kx, kp = jax.random.split(key)

    N, C, H, W = 2, 4, 16, 16
    F, NUM_CLASSES = 8, 10

    x = jax.random.normal(kx, (N, C, H, W), jnp.float32)   # NCHW, like PyTorch
    params = init_params(kp, c_in=C, c_out=F, h=H, w=W, num_classes=NUM_CLASSES)

    kops = prepare_kernel_operands(params, batch=N, height=H, width=W)
    out = fc_out_forward(x, kops)
    out = jax.block_until_ready(out)

    assert out.shape == (N, NUM_CLASSES), out.shape
    ref = reference_forward_np(x, params)
    np.testing.assert_allclose(np.asarray(out), ref, rtol=1e-3, atol=1e-3)
    print("KERNEL_OK")
</pallas_src>

<mosaic_0001>
module attributes {stable_mosaic.version = 11 : i64} {
  func.func @_fused_fc_out_kernel(%arg0: memref<2x18x72xf32, #tpu.memory_space<vmem>>, %arg1: memref<3x72x128xf32, #tpu.memory_space<vmem>>, %arg2: memref<1x128xf32, #tpu.memory_space<vmem>>, %arg3: memref<128x160xf32, #tpu.memory_space<vmem>>, %arg4: memref<32x160xf32, #tpu.memory_space<vmem>>, %arg5: memref<160x10xf32, #tpu.memory_space<vmem>>, %arg6: memref<2x32xf32, #tpu.memory_space<vmem>>, %arg7: memref<1x10xf32, #tpu.memory_space<vmem>>, %arg8: memref<2x10xf32, #tpu.memory_space<vmem>>) attributes {dimension_semantics = [], scalar_prefetch = 0 : i64, scratch_operands = 0 : i64, tpu.core_type = #tpu.core_type<tc>} {
    %c0 = arith.constant 0 : index
    %c0_0 = arith.constant 0 : index
    %c0_1 = arith.constant 0 : index
    %0 = vector.load %arg0[%c0, %c0_0, %c0_1] : memref<2x18x72xf32, #tpu.memory_space<vmem>>, vector<1x18x72xf32>
    %1 = vector.shape_cast %0 : vector<1x18x72xf32> to vector<18x72xf32>
    %2 = vector.extract_strided_slice %1 {offsets = [0, 0], sizes = [16, 72], strides = [1, 1]} : vector<18x72xf32> to vector<16x72xf32>
    %c0_2 = arith.constant 0 : index
    %c0_3 = arith.constant 0 : index
    %c0_4 = arith.constant 0 : index
    %3 = vector.load %arg1[%c0_2, %c0_3, %c0_4] : memref<3x72x128xf32, #tpu.memory_space<vmem>>, vector<1x72x128xf32>
    %4 = vector.shape_cast %3 : vector<1x72x128xf32> to vector<72x128xf32>
    %cst = arith.constant dense<0.000000e+00> : vector<16x128xf32>
    %5 = tpu.matmul %2, %4, %cst {dimension_numbers = #tpu.dot_dimension_numbers<[1], [0], [0], [1], [0, 0, 1, 1], [], []>} : vector<16x72xf32>, vector<72x128xf32>, vector<16x128xf32> -> vector<16x128xf32>
    %6 = vector.extract_strided_slice %1 {offsets = [1, 0], sizes = [16, 72], strides = [1, 1]} : vector<18x72xf32> to vector<16x72xf32>
    %c1 = arith.constant 1 : index
    %c0_5 = arith.constant 0 : index
    %c0_6 = arith.constant 0 : index
    %7 = vector.load %arg1[%c1, %c0_5, %c0_6] : memref<3x72x128xf32, #tpu.memory_space<vmem>>, vector<1x72x128xf32>
    %8 = vector.shape_cast %7 : vector<1x72x128xf32> to vector<72x128xf32>
    %cst_7 = arith.constant dense<0.000000e+00> : vector<16x128xf32>
    %9 = tpu.matmul %6, %8, %cst_7 {dimension_numbers = #tpu.dot_dimension_numbers<[1], [0], [0], [1], [0, 0, 1, 1], [], []>} : vector<16x72xf32>, vector<72x128xf32>, vector<16x128xf32> -> vector<16x128xf32>
    %10 = arith.addf %5, %9 : vector<16x128xf32>
    %11 = vector.extract_strided_slice %1 {offsets = [2, 0], sizes = [16, 72], strides = [1, 1]} : vector<18x72xf32> to vector<16x72xf32>
    %c2 = arith.constant 2 : index
    %c0_8 = arith.constant 0 : index
    %c0_9 = arith.constant 0 : index
    %12 = vector.load %arg1[%c2, %c0_8, %c0_9] : memref<3x72x128xf32, #tpu.memory_space<vmem>>, vector<1x72x128xf32>
    %13 = vector.shape_cast %12 : vector<1x72x128xf32> to vector<72x128xf32>
    %cst_10 = arith.constant dense<0.000000e+00> : vector<16x128xf32>
    %14 = tpu.matmul %11, %13, %cst_10 {dimension_numbers = #tpu.dot_dimension_numbers<[1], [0], [0], [1], [0, 0, 1, 1], [], []>} : vector<16x72xf32>, vector<72x128xf32>, vector<16x128xf32> -> vector<16x128xf32>
    %15 = arith.addf %10, %14 : vector<16x128xf32>
    %c1_11 = arith.constant 1 : index
    %c0_12 = arith.constant 0 : index
    %c0_13 = arith.constant 0 : index
    %16 = vector.load %arg0[%c1_11, %c0_12, %c0_13] : memref<2x18x72xf32, #tpu.memory_space<vmem>>, vector<1x18x72xf32>
    %17 = vector.shape_cast %16 : vector<1x18x72xf32> to vector<18x72xf32>
    %18 = vector.extract_strided_slice %17 {offsets = [0, 0], sizes = [16, 72], strides = [1, 1]} : vector<18x72xf32> to vector<16x72xf32>
    %c0_14 = arith.constant 0 : index
    %c0_15 = arith.constant 0 : index
    %c0_16 = arith.constant 0 : index
    %19 = vector.load %arg1[%c0_14, %c0_15, %c0_16] : memref<3x72x128xf32, #tpu.memory_space<vmem>>, vector<1x72x128xf32>
    %20 = vector.shape_cast %19 : vector<1x72x128xf32> to vector<72x128xf32>
    %cst_17 = arith.constant dense<0.000000e+00> : vector<16x128xf32>
    %21 = tpu.matmul %18, %20, %cst_17 {dimension_numbers = #tpu.dot_dimension_numbers<[1], [0], [0], [1], [0, 0, 1, 1], [], []>} : vector<16x72xf32>, vector<72x128xf32>, vector<16x128xf32> -> vector<16x128xf32>
    %22 = vector.extract_strided_slice %17 {offsets = [1, 0], sizes = [16, 72], strides = [1, 1]} : vector<18x72xf32> to vector<16x72xf32>
    %c1_18 = arith.constant 1 : index
    %c0_19 = arith.constant 0 : index
    %c0_20 = arith.constant 0 : index
    %23 = vector.load %arg1[%c1_18, %c0_19, %c0_20] : memref<3x72x128xf32, #tpu.memory_space<vmem>>, vector<1x72x128xf32>
    %24 = vector.shape_cast %23 : vector<1x72x128xf32> to vector<72x128xf32>
    %cst_21 = arith.constant dense<0.000000e+00> : vector<16x128xf32>
    %25 = tpu.matmul %22, %24, %cst_21 {dimension_numbers = #tpu.dot_dimension_numbers<[1], [0], [0], [1], [0, 0, 1, 1], [], []>} : vector<16x72xf32>, vector<72x128xf32>, vector<16x128xf32> -> vector<16x128xf32>
    %26 = arith.addf %21, %25 : vector<16x128xf32>
    %27 = vector.extract_strided_slice %17 {offsets = [2, 0], sizes = [16, 72], strides = [1, 1]} : vector<18x72xf32> to vector<16x72xf32>
    %c2_22 = arith.constant 2 : index
    %c0_23 = arith.constant 0 : index
    %c0_24 = arith.constant 0 : index
    %28 = vector.load %arg1[%c2_22, %c0_23, %c0_24] : memref<3x72x128xf32, #tpu.memory_space<vmem>>, vector<1x72x128xf32>
    %29 = vector.shape_cast %28 : vector<1x72x128xf32> to vector<72x128xf32>
    %cst_25 = arith.constant dense<0.000000e+00> : vector<16x128xf32>
    %30 = tpu.matmul %27, %29, %cst_25 {dimension_numbers = #tpu.dot_dimension_numbers<[1], [0], [0], [1], [0, 0, 1, 1], [], []>} : vector<16x72xf32>, vector<72x128xf32>, vector<16x128xf32> -> vector<16x128xf32>
    %31 = arith.addf %26, %30 : vector<16x128xf32>
    %32 = tpu.concatenate %15, %31 in 0 : vector<16x128xf32>, vector<16x128xf32> -> vector<32x128xf32>
    %c0_26 = arith.constant 0 : index
    %c0_27 = arith.constant 0 : index
    %33 = vector.load %arg2[%c0_26, %c0_27] : memref<1x128xf32, #tpu.memory_space<vmem>>, vector<1x128xf32>
    %34 = vector.broadcast %33 : vector<1x128xf32> to vector<32x128xf32>
    %35 = arith.addf %32, %34 : vector<32x128xf32>
    %cst_28 = arith.constant 0.000000e+00 : f32
    %36 = vector.broadcast %cst_28 : f32 to vector<32x128xf32>
    %37 = arith.maximumf %35, %36 : vector<32x128xf32>
    %c0_29 = arith.constant 0 : index
    %c0_30 = arith.constant 0 : index
    %38 = vector.load %arg3[%c0_29, %c0_30] : memref<128x160xf32, #tpu.memory_space<vmem>>, vector<128x160xf32>
    %cst_31 = arith.constant dense<0.000000e+00> : vector<32x160xf32>
    %39 = tpu.matmul %37, %38, %cst_31 {dimension_numbers = #tpu.dot_dimension_numbers<[1], [0], [0], [1], [0, 0, 1, 1], [], []>} : vector<32x128xf32>, vector<128x160xf32>, vector<32x160xf32> -> vector<32x160xf32>
    %c0_32 = arith.constant 0 : index
    %c0_33 = arith.constant 0 : index
    %40 = vector.load %arg4[%c0_32, %c0_33] : memref<32x160xf32, #tpu.memory_space<vmem>>, vector<32x160xf32>
    %41 = arith.mulf %39, %40 : vector<32x160xf32>
    %c0_34 = arith.constant 0 : index
    %c0_35 = arith.constant 0 : index
    %42 = vector.load %arg5[%c0_34, %c0_35] : memref<160x10xf32, #tpu.memory_space<vmem>>, vector<160x10xf32>
    %cst_36 = arith.constant dense<0.000000e+00> : vector<32x10xf32>
    %43 = tpu.matmul %41, %42, %cst_36 {dimension_numbers = #tpu.dot_dimension_numbers<[1], [0], [0], [1], [0, 0, 1, 1], [], []>} : vector<32x160xf32>, vector<160x10xf32>, vector<32x10xf32> -> vector<32x10xf32>
    %c0_37 = arith.constant 0 : index
    %c0_38 = arith.constant 0 : index
    %44 = vector.load %arg6[%c0_37, %c0_38] : memref<2x32xf32, #tpu.memory_space<vmem>>, vector<2x32xf32>
    %cst_39 = arith.constant dense<0.000000e+00> : vector<2x10xf32>
    %45 = tpu.matmul %44, %43, %cst_39 {dimension_numbers = #tpu.dot_dimension_numbers<[1], [0], [0], [1], [0, 0, 1, 1], [], []>} : vector<2x32xf32>, vector<32x10xf32>, vector<2x10xf32> -> vector<2x10xf32>
    %c0_40 = arith.constant 0 : index
    %c0_41 = arith.constant 0 : index
    %46 = vector.load %arg7[%c0_40, %c0_41] : memref<1x10xf32, #tpu.memory_space<vmem>>, vector<1x10xf32>
    %47 = vector.broadcast %46 : vector<1x10xf32> to vector<2x10xf32>
    %48 = arith.addf %45, %47 : vector<2x10xf32>
    %c0_42 = arith.constant 0 : index
    %c0_43 = arith.constant 0 : index
    %49 = vector.load %arg8[%c0_42, %c0_43] : memref<2x10xf32, #tpu.memory_space<vmem>>, vector<2x10xf32>
    tpu.vector_store %arg8[%c0_42, %c0_43], %48 {strides = array<i32>} : memref<2x10xf32, #tpu.memory_space<vmem>>, vector<2x10xf32>,
    return
  }
}

</mosaic_0001>

<llo_original>
// kernel: tpu_custom_call.1
$region0: #{tpu_custom_call.1}
  #allocation0 [shape = 'u32[]', space=smem, size = 0x4, offset = 0x4, fixed_abs, tag = 'smem constant byte address 0x4 - core index']
  #allocation1 [shape = 'u32[144,128]{1,0:T(1,128)}', space=vmem, size = 0x12000, scoped, tag = 'internal scratch']
  %s0 = inlined_call_operand.vmem [shape: f32[2,18,72], index: 0, kind: input, shape index: {}]
  %s1 = inlined_call_operand.vmem [shape: f32[3,72,128], index: 1, kind: input, shape index: {}]
  %s2 = inlined_call_operand.vmem [shape: f32[1,128], index: 2, kind: input, shape index: {}]
  %s3 = inlined_call_operand.vmem [shape: f32[128,160], index: 3, kind: input, shape index: {}]
  %s4 = inlined_call_operand.vmem [shape: f32[32,160], index: 4, kind: input, shape index: {}]
  %s5 = inlined_call_operand.vmem [shape: f32[160,10], index: 5, kind: input, shape index: {}]
  %s6 = inlined_call_operand.vmem [shape: f32[2,32], index: 6, kind: input, shape index: {}]
  %s7 = inlined_call_operand.vmem [shape: f32[1,10], index: 7, kind: input, shape index: {}]
  %s8 = inlined_call_operand.hbm [shape: f32[2,10], index: 8, kind: output, shape index: {}]
  %s9 = sld [smem:[#allocation0]]
  $region42: #{tpu_custom_call.1} parent=0
    _
  %s11 = ssub.s32 1, %s9
  %s12 = scalar_select 0, %s11, %s9
  $region1: #{tpu_custom_call.1} parent=0
    #allocation2 [shape = 'u8[1024]{0}', space=vmem, size = 0x400, scoped, tag = 'output window, operand 0, single buffered']
    #allocation3 [shape = 's32[1]{0}', space=sflag, size = 0x4, scoped, tag = 'scoped memory for tpu_custom_call.1']
    %13 = vsyncpa [#allocation3], 0
    // Predicated region
    $region2: #{tpu_custom_call.1} parent=1 // pred_check
      _
    $region3: #{tpu_custom_call.1} parent=1 // pred_check_branch
      %15 = sbr.rel (0) target = $region5
    $region4: #{tpu_custom_call.1} parent=1 // pred_region
      _
    $region5: #{tpu_custom_call.1} parent=1 // pred_fallthru
      _
    // Predicated region
    $region6: #{tpu_custom_call.1} parent=1 // pred_check
      _
    $region7: #{tpu_custom_call.1} parent=1 // pred_check_branch
      %17 = sbr.rel (0) target = $region9
    $region8: #{tpu_custom_call.1} parent=1 // pred_region
      _
    $region9: #{tpu_custom_call.1} parent=1 // pred_fallthru
      _
    // Predicated region
    $region10: #{tpu_custom_call.1} parent=1 // pred_check
      _
    $region11: #{tpu_custom_call.1} parent=1 // pred_check_branch
      %19 = sbr.rel (0) target = $region13
    $region12: #{tpu_custom_call.1} parent=1 // pred_region
      _
    $region13: #{tpu_custom_call.1} parent=1 // pred_fallthru
      _
    // Predicated region
    $region14: #{tpu_custom_call.1} parent=1 // pred_check
      _
    $region15: #{tpu_custom_call.1} parent=1 // pred_check_branch
      %21 = sbr.rel (0) target = $region17
    $region16: #{tpu_custom_call.1} parent=1 // pred_region
      _
    $region17: #{tpu_custom_call.1} parent=1 // pred_fallthru
      _
    // Predicated region
    $region18: #{tpu_custom_call.1} parent=1 // pred_check
      _
    $region19: #{tpu_custom_call.1} parent=1 // pred_check_branch
      %23 = sbr.rel (0) target = $region21
    $region20: #{tpu_custom_call.1} parent=1 // pred_region
      _
    $region21: #{tpu_custom_call.1} parent=1 // pred_fallthru
      _
    // Predicated region
    $region22: #{tpu_custom_call.1} parent=1 // pred_check
      _
    $region23: #{tpu_custom_call.1} parent=1 // pred_check_branch
      %25 = sbr.rel (0) target = $region25
    $region24: #{tpu_custom_call.1} parent=1 // pred_region
      _
    $region25: #{tpu_custom_call.1} parent=1 // pred_fallthru
      _
    // Predicated region
    $region26: #{tpu_custom_call.1} parent=1 // pred_check
      _
    $region27: #{tpu_custom_call.1} parent=1 // pred_check_branch
      %27 = sbr.rel (0) target = $region29
    $region28: #{tpu_custom_call.1} parent=1 // pred_region
      _
    $region29: #{tpu_custom_call.1} parent=1 // pred_fallthru
      _
    // Predicated region
    $region30: #{tpu_custom_call.1} parent=1 // pred_check
      _
    $region31: #{tpu_custom_call.1} parent=1 // pred_check_branch
      %29 = sbr.rel (0) target = $region33
    $region32: #{tpu_custom_call.1} parent=1 // pred_region
      _
    $region33: #{tpu_custom_call.1} parent=1 // pred_fallthru
      _
    %v30 = vld [vmem:[%s0] sm:$0xff]
    %v31 = vld [vmem:[%s0 + $0x8] sm:$0xff]
    %v32 = vld [vmem:[%s0 + $0x10] sm:$0x3]
    %v33 = vld [vmem:[%s1] sm:$0xff]
    %v34 = vld [vmem:[%s1 + $0x8] sm:$0xff]
    %v35 = vld [vmem:[%s1 + $0x10] sm:$0xff]
    %v36 = vld [vmem:[%s1 + $0x18] sm:$0xff]
    %v37 = vld [vmem:[%s1 + $0x20] sm:$0xff]
    %v38 = vld [vmem:[%s1 + $0x28] sm:$0xff]
    %v39 = vld [vmem:[%s1 + $0x30] sm:$0xff]
    %v40 = vld [vmem:[%s1 + $0x38] sm:$0xff]
    %v41 = vld [vmem:[%s1 + $0x40] sm:$0xff]
    %s42 = scalar_lea.vmem %s1, 72
    %v43 = vld [vmem:[%s42] sm:$0xff]
    %v44 = vld [vmem:[%s42 + $0x8] sm:$0xff]
    %v45 = vld [vmem:[%s42 + $0x10] sm:$0xff]
    %v46 = vld [vmem:[%s42 + $0x18] sm:$0xff]
    %v47 = vld [vmem:[%s42 + $0x20] sm:$0xff]
    %v48 = vld [vmem:[%s42 + $0x28] sm:$0xff]
    %v49 = vld [vmem:[%s42 + $0x30] sm:$0xff]
    %v50 = vld [vmem:[%s42 + $0x38] sm:$0xff]
    %v51 = vld [vmem:[%s42 + $0x40] sm:$0xff]
    %vm55 = vcmask 1046528
    %v56 = vrot.slane %v30, 1
    %v57 = vrot.slane %v31, 1
    %v58 = vsel %vm55, %v56, %v57
    %v59 = vrot.slane %v32, 1
    %v60 = vsel %vm55, %v57, %v59
    %vm61 = vcmask 588800
    %v62 = vsel %vm61, %v58, 0
    %v64 = vsel %vm61, %v60, 0
    %66 = vmatprep.subr.mxu0 0.0
    %67 = vmatpush1.msra.mxu0 0.0
    %68 = vmatprep.subr.mxu0 0.0
    %69 = vmatpush1.msra.mxu0 0.0
    %70 = vmatprep.subr.mxu0 0.0
    %71 = vmatpush1.msra.mxu0 0.0
    %72 = vmatprep.subr.mxu0 0.0
    %73 = vmatpush1.msra.mxu0 0.0
    %74 = vmatprep.subr.mxu0 0.0
    %75 = vmatpush1.msra.mxu0 0.0
    %76 = vmatprep.subr.mxu0 0.0
    %77 = vmatpush1.msra.mxu0 0.0
    %78 = vmatprep.subr.mxu0 0.0
    %79 = vmatpush1.msra.mxu0 0.0
    %80 = vmatprep.subr.mxu0 0.0
    %81 = vmatpush1.msra.mxu0 %v51
    %82 = vmatprep.subr.mxu0 0.0
    %83 = vmatpush1.msra.mxu0 %v50
    %84 = vmatprep.subr.mxu0 0.0
    %85 = vmatpush1.msra.mxu0 %v49
    %86 = vmatprep.subr.mxu0 0.0
    %87 = vmatpush1.msra.mxu0 %v48
    %88 = vmatprep.subr.mxu0 0.0
    %89 = vmatpush1.msra.mxu0 %v47
    %90 = vmatprep.subr.mxu0 0.0
    %91 = vmatpush1.msra.mxu0 %v46
    %92 = vmatprep.subr.mxu0 0.0
    %93 = vmatpush1.msra.mxu0 %v45
    %94 = vmatprep.subr.mxu0 0.0
    %95 = vmatpush1.msra.mxu0 %v44
    %96 = vmatprep.subr.mxu0 0.0
    %97 = vmatpush1.msra.mxu0 %v43
    %98 = vmatprep.subr.mxu0 0.0
    %99 = vmatpush2.msra.mxu0 0.0
    %100 = vmatprep.subr.mxu0 0.0
    %101 = vmatpush2.msra.mxu0 0.0
    %102 = vmatprep.subr.mxu0 0.0
    %103 = vmatpush2.msra.mxu0 0.0
    %104 = vmatprep.subr.mxu0 0.0
    %105 = vmatpush2.msra.mxu0 0.0
    %106 = vmatprep.subr.mxu0 0.0
    %107 = vmatpush2.msra.mxu0 0.0
    %108 = vmatprep.subr.mxu0 0.0
    %109 = vmatpush2.msra.mxu0 0.0
    %110 = vmatprep.subr.mxu0 0.0
    %111 = vmatpush2.msra.mxu0 0.0
    %112 = vmatprep.subr.mxu0 0.0
    %113 = vmatpush2.msra.mxu0 0.0
    %114 = vmatprep.subr.mxu0 0.0
    %115 = vmatpush2.msra.mxu0 0.0
    %116 = vmatprep.subr.mxu0 0.0
    %117 = vmatpush2.msra.mxu0 0.0
    %118 = vmatprep.subr.mxu0 0.0
    %119 = vmatpush2.msra.mxu0 0.0
    %120 = vmatprep.subr.mxu0 0.0
    %121 = vmatpush2.msra.mxu0 0.0
    %122 = vmatprep.subr.mxu0 0.0
    %123 = vmatpush2.msra.mxu0 0.0
    %124 = vmatprep.subr.mxu0 0.0
    %125 = vmatpush2.msra.mxu0 0.0
    %126 = vmatprep.subr.mxu0 0.0
    %127 = vmatpush2.msra.mxu0 0.0
    %128 = vmatprep.subr.mxu0 0.0
    %129 = vmatpush2.msra.mxu0 0.0
    %130 = vmatprep.mubr.f32.mxu0 0.0
    %131 = vmatmul.mubr.f32.gmra.mxu0 %v62
    %v132 = vpop.f32.mrf.mxu0
    %v133 = vadd.f32 0.0, %v132
    %v134 = vpop.f32.mrf.mxu0
    %135 = vmatprep.mubr.f32.mxu0 0.0
    %136 = vmatmul.mubr.f32.gmra.mxu0 %v64
    %v137 = vpop.f32.mrf.mxu0
    %v138 = vadd.f32 0.0, %v137
    %v139 = vpop.f32.mrf.mxu0
    %140 = vdwg.mxu0
    %v141 = vsel %vm61, %v30, 0
    %v143 = vsel %vm61, %v31, 0
    %145 = vmatprep.subr.mxu0 0.0
    %146 = vmatpush1.msra.mxu0 0.0
    %147 = vmatprep.subr.mxu0 0.0
    %148 = vmatpush1.msra.mxu0 0.0
    %149 = vmatprep.subr.mxu0 0.0
    %150 = vmatpush1.msra.mxu0 0.0
    %151 = vmatprep.subr.mxu0 0.0
    %152 = vmatpush1.msra.mxu0 0.0
    %153 = vmatprep.subr.mxu0 0.0
    %154 = vmatpush1.msra.mxu0 0.0
    %155 = vmatprep.subr.mxu0 0.0
    %156 = vmatpush1.msra.mxu0 0.0
    %157 = vmatprep.subr.mxu0 0.0
    %158 = vmatpush1.msra.mxu0 0.0
    %159 = vmatprep.subr.mxu0 0.0
    %160 = vmatpush1.msra.mxu0 %v41
    %161 = vmatprep.subr.mxu0 0.0
    %162 = vmatpush1.msra.mxu0 %v40
    %163 = vmatprep.subr.mxu0 0.0
    %164 = vmatpush1.msra.mxu0 %v39
    %165 = vmatprep.subr.mxu0 0.0
    %166 = vmatpush1.msra.mxu0 %v38
    %167 = vmatprep.subr.mxu0 0.0
    %168 = vmatpush1.msra.mxu0 %v37
    %169 = vmatprep.subr.mxu0 0.0
    %170 = vmatpush1.msra.mxu0 %v36
    %171 = vmatprep.subr.mxu0 0.0
    %172 = vmatpush1.msra.mxu0 %v35
    %173 = vmatprep.subr.mxu0 0.0
    %174 = vmatpush1.msra.mxu0 %v34
    %175 = vmatprep.subr.mxu0 0.0
    %176 = vmatpush1.msra.mxu0 %v33
    %177 = vmatprep.subr.mxu0 0.0
    %178 = vmatpush2.msra.mxu0 0.0
    %179 = vmatprep.subr.mxu0 0.0
    %180 = vmatpush2.msra.mxu0 0.0
    %181 = vmatprep.subr.mxu0 0.0
    %182 = vmatpush2.msra.mxu0 0.0
    %183 = vmatprep.subr.mxu0 0.0
    %184 = vmatpush2.msra.mxu0 0.0
    %185 = vmatprep.subr.mxu0 0.0
    %186 = vmatpush2.msra.mxu0 0.0
    %187 = vmatprep.subr.mxu0 0.0
    %188 = vmatpush2.msra.mxu0 0.0
    %189 = vmatprep.subr.mxu0 0.0
    %190 = vmatpush2.msra.mxu0 0.0
    %191 = vmatprep.subr.mxu0 0.0
    %192 = vmatpush2.msra.mxu0 0.0
    %193 = vmatprep.subr.mxu0 0.0
    %194 = vmatpush2.msra.mxu0 0.0
    %195 = vmatprep.subr.mxu0 0.0
    %196 = vmatpush2.msra.mxu0 0.0
    %197 = vmatprep.subr.mxu0 0.0
    %198 = vmatpush2.msra.mxu0 0.0
    %199 = vmatprep.subr.mxu0 0.0
    %200 = vmatpush2.msra.mxu0 0.0
    %201 = vmatprep.subr.mxu0 0.0
    %202 = vmatpush2.msra.mxu0 0.0
    %203 = vmatprep.subr.mxu0 0.0
    %204 = vmatpush2.msra.mxu0 0.0
    %205 = vmatprep.subr.mxu0 0.0
    %206 = vmatpush2.msra.mxu0 0.0
    %207 = vmatprep.subr.mxu0 0.0
    %208 = vmatpush2.msra.mxu0 0.0
    %209 = vmatprep.mubr.f32.mxu0 0.0
    %210 = vmatmul.mubr.f32.gmra.mxu0 %v141
    %v211 = vpop.f32.mrf.mxu0
    %v212 = vadd.f32 %v133, %v211
    %v213 = vpop.f32.mrf.mxu0
    %214 = vmatprep.mubr.f32.mxu0 0.0
    %215 = vmatmul.mubr.f32.gmra.mxu0 %v143
    %v216 = vpop.f32.mrf.mxu0
    %v217 = vadd.f32 %v138, %v216
    %v218 = vpop.f32.mrf.mxu0
    %219 = vdwg.mxu0
    %s220 = scalar_lea.vmem %s1, 144
    %v221 = vld [vmem:[%s220] sm:$0xff]
    %v222 = vld [vmem:[%s220 + $0x8] sm:$0xff]
    %v223 = vld [vmem:[%s220 + $0x10] sm:$0xff]
    %v224 = vld [vmem:[%s220 + $0x18] sm:$0xff]
    %v225 = vld [vmem:[%s220 + $0x20] sm:$0xff]
    %v226 = vld [vmem:[%s220 + $0x28] sm:$0xff]
    %v227 = vld [vmem:[%s220 + $0x30] sm:$0xff]
    %v228 = vld [vmem:[%s220 + $0x38] sm:$0xff]
    %v229 = vld [vmem:[%s220 + $0x40] sm:$0xff]
    %vm230 = vcmask 1045504
    %v231 = vrot.slane %v30, 2
    %v232 = vrot.slane %v31, 2
    %v233 = vsel %vm230, %v231, %v232
    %v234 = vrot.slane %v32, 2
    %v235 = vsel %vm230, %v232, %v234
    %v236 = vsel %vm61, %v233, 0
    %v238 = vsel %vm61, %v235, 0
    %240 = vmatprep.subr.mxu0 0.0
    %241 = vmatpush1.msra.mxu0 0.0
    %242 = vmatprep.subr.mxu0 0.0
    %243 = vmatpush1.msra.mxu0 0.0
    %244 = vmatprep.subr.mxu0 0.0
    %245 = vmatpush1.msra.mxu0 0.0
    %246 = vmatprep.subr.mxu0 0.0
    %247 = vmatpush1.msra.mxu0 0.0
    %248 = vmatprep.subr.mxu0 0.0
    %249 = vmatpush1.msra.mxu0 0.0
    %250 = vmatprep.subr.mxu0 0.0
    %251 = vmatpush1.msra.mxu0 0.0
    %252 = vmatprep.subr.mxu0 0.0
    %253 = vmatpush1.msra.mxu0 0.0
    %254 = vmatprep.subr.mxu0 0.0
    %255 = vmatpush1.msra.mxu0 %v229
    %256 = vmatprep.subr.mxu0 0.0
    %257 = vmatpush1.msra.mxu0 %v228
    %258 = vmatprep.subr.mxu0 0.0
    %259 = vmatpush1.msra.mxu0 %v227
    %260 = vmatprep.subr.mxu0 0.0
    %261 = vmatpush1.msra.mxu0 %v226
    %262 = vmatprep.subr.mxu0 0.0
    %263 = vmatpush1.msra.mxu0 %v225
    %264 = vmatprep.subr.mxu0 0.0
    %265 = vmatpush1.msra.mxu0 %v224
    %266 = vmatprep.subr.mxu0 0.0
    %267 = vmatpush1.msra.mxu0 %v223
    %268 = vmatprep.subr.mxu0 0.0
    %269 = vmatpush1.msra.mxu0 %v222
    %270 = vmatprep.subr.mxu0 0.0
    %271 = vmatpush1.msra.mxu0 %v221
    %272 = vmatprep.subr.mxu0 0.0
    %273 = vmatpush2.msra.mxu0 0.0
    %274 = vmatprep.subr.mxu0 0.0
    %275 = vmatpush2.msra.mxu0 0.0
    %276 = vmatprep.subr.mxu0 0.0
    %277 = vmatpush2.msra.mxu0 0.0
    %278 = vmatprep.subr.mxu0 0.0
    %279 = vmatpush2.msra.mxu0 0.0
    %280 = vmatprep.subr.mxu0 0.0
    %281 = vmatpush2.msra.mxu0 0.0
    %282 = vmatprep.subr.mxu0 0.0
    %283 = vmatpush2.msra.mxu0 0.0
    %284 = vmatprep.subr.mxu0 0.0
    %285 = vmatpush2.msra.mxu0 0.0
    %286 = vmatprep.subr.mxu0 0.0
    %287 = vmatpush2.msra.mxu0 0.0
    %288 = vmatprep.subr.mxu0 0.0
    %289 = vmatpush2.msra.mxu0 0.0
    %290 = vmatprep.subr.mxu0 0.0
    %291 = vmatpush2.msra.mxu0 0.0
    %292 = vmatprep.subr.mxu0 0.0
    %293 = vmatpush2.msra.mxu0 0.0
    %294 = vmatprep.subr.mxu0 0.0
    %295 = vmatpush2.msra.mxu0 0.0
    %296 = vmatprep.subr.mxu0 0.0
    %297 = vmatpush2.msra.mxu0 0.0
    %298 = vmatprep.subr.mxu0 0.0
    %299 = vmatpush2.msra.mxu0 0.0
    %300 = vmatprep.subr.mxu0 0.0
    %301 = vmatpush2.msra.mxu0 0.0
    %302 = vmatprep.subr.mxu0 0.0
    %303 = vmatpush2.msra.mxu0 0.0
    %304 = vmatprep.mubr.f32.mxu0 0.0
    %305 = vmatmul.mubr.f32.gmra.mxu0 %v236
    %v306 = vpop.f32.mrf.mxu0
    %v307 = vadd.f32 0.0, %v306
    %v308 = vpop.f32.mrf.mxu0
    %309 = vmatprep.mubr.f32.mxu0 0.0
    %310 = vmatmul.mubr.f32.gmra.mxu0 %v238
    %v311 = vpop.f32.mrf.mxu0
    %v312 = vadd.f32 0.0, %v311
    %v313 = vpop.f32.mrf.mxu0
    %314 = vdwg.mxu0
    %v315 = vadd.f32 %v212, %v307
    %v316 = vadd.f32 %v217, %v312
    %s317 = scalar_lea.vmem %s0, 24
    %v318 = vld [vmem:[%s317] sm:$0xff]
    %v319 = vld [vmem:[%s317 + $0x8] sm:$0xff]
    %v320 = vld [vmem:[%s317 + $0x10] sm:$0x3]
    %v324 = vrot.slane %v318, 1
    %v325 = vrot.slane %v319, 1
    %v326 = vsel %vm55, %v324, %v325
    %v327 = vrot.slane %v320, 1
    %v328 = vsel %vm55, %v325, %v327
    %v329 = vsel %vm61, %v326, 0
    %v331 = vsel %vm61, %v328, 0
    %333 = vmatprep.subr.mxu0 0.0
    %334 = vmatpush1.msra.mxu0 0.0
    %335 = vmatprep.subr.mxu0 0.0
    %336 = vmatpush1.msra.mxu0 0.0
    %337 = vmatprep.subr.mxu0 0.0
    %338 = vmatpush1.msra.mxu0 0.0
    %339 = vmatprep.subr.mxu0 0.0
    %340 = vmatpush1.msra.mxu0 0.0
    %341 = vmatprep.subr.mxu0 0.0
    %342 = vmatpush1.msra.mxu0 0.0
    %343 = vmatprep.subr.mxu0 0.0
    %344 = vmatpush1.msra.mxu0 0.0
    %345 = vmatprep.subr.mxu0 0.0
    %346 = vmatpush1.msra.mxu0 0.0
    %347 = vmatprep.subr.mxu0 0.0
    %348 = vmatpush1.msra.mxu0 %v51
    %349 = vmatprep.subr.mxu0 0.0
    %350 = vmatpush1.msra.mxu0 %v50
    %351 = vmatprep.subr.mxu0 0.0
    %352 = vmatpush1.msra.mxu0 %v49
    %353 = vmatprep.subr.mxu0 0.0
    %354 = vmatpush1.msra.mxu0 %v48
    %355 = vmatprep.subr.mxu0 0.0
    %356 = vmatpush1.msra.mxu0 %v47
    %357 = vmatprep.subr.mxu0 0.0
    %358 = vmatpush1.msra.mxu0 %v46
    %359 = vmatprep.subr.mxu0 0.0
    %360 = vmatpush1.msra.mxu0 %v45
    %361 = vmatprep.subr.mxu0 0.0
    %362 = vmatpush1.msra.mxu0 %v44
    %363 = vmatprep.subr.mxu0 0.0
    %364 = vmatpush1.msra.mxu0 %v43
    %365 = vmatprep.subr.mxu0 0.0
    %366 = vmatpush2.msra.mxu0 0.0
    %367 = vmatprep.subr.mxu0 0.0
    %368 = vmatpush2.msra.mxu0 0.0
    %369 = vmatprep.subr.mxu0 0.0
    %370 = vmatpush2.msra.mxu0 0.0
    %371 = vmatprep.subr.mxu0 0.0
    %372 = vmatpush2.msra.mxu0 0.0
    %373 = vmatprep.subr.mxu0 0.0
    %374 = vmatpush2.msra.mxu0 0.0
    %375 = vmatprep.subr.mxu0 0.0
    %376 = vmatpush2.msra.mxu0 0.0
    %377 = vmatprep.subr.mxu0 0.0
    %378 = vmatpush2.msra.mxu0 0.0
    %379 = vmatprep.subr.mxu0 0.0
    %380 = vmatpush2.msra.mxu0 0.0
    %381 = vmatprep.subr.mxu0 0.0
    %382 = vmatpush2.msra.mxu0 0.0
    %383 = vmatprep.subr.mxu0 0.0
    %384 = vmatpush2.msra.mxu0 0.0
    %385 = vmatprep.subr.mxu0 0.0
    %386 = vmatpush2.msra.mxu0 0.0
    %387 = vmatprep.subr.mxu0 0.0
    %388 = vmatpush2.msra.mxu0 0.0
    %389 = vmatprep.subr.mxu0 0.0
    %390 = vmatpush2.msra.mxu0 0.0
    %391 = vmatprep.subr.mxu0 0.0
    %392 = vmatpush2.msra.mxu0 0.0
    %393 = vmatprep.subr.mxu0 0.0
    %394 = vmatpush2.msra.mxu0 0.0
    %395 = vmatprep.subr.mxu0 0.0
    %396 = vmatpush2.msra.mxu0 0.0
    %397 = vmatprep.mubr.f32.mxu0 0.0
    %398 = vmatmul.mubr.f32.gmra.mxu0 %v329
    %v399 = vpop.f32.mrf.mxu0
    %v400 = vadd.f32 0.0, %v399
    %v401 = vpop.f32.mrf.mxu0
    %402 = vmatprep.mubr.f32.mxu0 0.0
    %403 = vmatmul.mubr.f32.gmra.mxu0 %v331
    %v404 = vpop.f32.mrf.mxu0
    %v405 = vadd.f32 0.0, %v404
    %v406 = vpop.f32.mrf.mxu0
    %407 = vdwg.mxu0
    %v408 = vsel %vm61, %v318, 0
    %v410 = vsel %vm61, %v319, 0
    %412 = vmatprep.subr.mxu0 0.0
    %413 = vmatpush1.msra.mxu0 0.0
    %414 = vmatprep.subr.mxu0 0.0
    %415 = vmatpush1.msra.mxu0 0.0
    %416 = vmatprep.subr.mxu0 0.0
    %417 = vmatpush1.msra.mxu0 0.0
    %418 = vmatprep.subr.mxu0 0.0
    %419 = vmatpush1.msra.mxu0 0.0
    %420 = vmatprep.subr.mxu0 0.0
    %421 = vmatpush1.msra.mxu0 0.0
    %422 = vmatprep.subr.mxu0 0.0
    %423 = vmatpush1.msra.mxu0 0.0
    %424 = vmatprep.subr.mxu0 0.0
    %425 = vmatpush1.msra.mxu0 0.0
    %426 = vmatprep.subr.mxu0 0.0
    %427 = vmatpush1.msra.mxu0 %v41
    %428 = vmatprep.subr.mxu0 0.0
    %429 = vmatpush1.msra.mxu0 %v40
    %430 = vmatprep.subr.mxu0 0.0
    %431 = vmatpush1.msra.mxu0 %v39
    %432 = vmatprep.subr.mxu0 0.0
    %433 = vmatpush1.msra.mxu0 %v38
    %434 = vmatprep.subr.mxu0 0.0
    %435 = vmatpush1.msra.mxu0 %v37
    %436 = vmatprep.subr.mxu0 0.0
    %437 = vmatpush1.msra.mxu0 %v36
    %438 = vmatprep.subr.mxu0 0.0
    %439 = vmatpush1.msra.mxu0 %v35
    %440 = vmatprep.subr.mxu0 0.0
    %441 = vmatpush1.msra.mxu0 %v34
    %442 = vmatprep.subr.mxu0 0.0
    %443 = vmatpush1.msra.mxu0 %v33
    %444 = vmatprep.subr.mxu0 0.0
    %445 = vmatpush2.msra.mxu0 0.0
    %446 = vmatprep.subr.mxu0 0.0
    %447 = vmatpush2.msra.mxu0 0.0
    %448 = vmatprep.subr.mxu0 0.0
    %449 = vmatpush2.msra.mxu0 0.0
    %450 = vmatprep.subr.mxu0 0.0
    %451 = vmatpush2.msra.mxu0 0.0
    %452 = vmatprep.subr.mxu0 0.0
    %453 = vmatpush2.msra.mxu0 0.0
    %454 = vmatprep.subr.mxu0 0.0
    %455 = vmatpush2.msra.mxu0 0.0
    %456 = vmatprep.subr.mxu0 0.0
    %457 = vmatpush2.msra.mxu0 0.0
    %458 = vmatprep.subr.mxu0 0.0
    %459 = vmatpush2.msra.mxu0 0.0
    %460 = vmatprep.subr.mxu0 0.0
    %461 = vmatpush2.msra.mxu0 0.0
    %462 = vmatprep.subr.mxu0 0.0
    %463 = vmatpush2.msra.mxu0 0.0
    %464 = vmatprep.subr.mxu0 0.0
    %465 = vmatpush2.msra.mxu0 0.0
    %466 = vmatprep.subr.mxu0 0.0
    %467 = vmatpush2.msra.mxu0 0.0
    %468 = vmatprep.subr.mxu0 0.0
    %469 = vmatpush2.msra.mxu0 0.0
    %470 = vmatprep.subr.mxu0 0.0
    %471 = vmatpush2.msra.mxu0 0.0
    %472 = vmatprep.subr.mxu0 0.0
    %473 = vmatpush2.msra.mxu0 0.0
    %474 = vmatprep.subr.mxu0 0.0
    %475 = vmatpush2.msra.mxu0 0.0
    %476 = vmatprep.mubr.f32.mxu0 0.0
    %477 = vmatmul.mubr.f32.gmra.mxu0 %v408
    %v478 = vpop.f32.mrf.mxu0
    %v479 = vadd.f32 %v400, %v478
    %v480 = vpop.f32.mrf.mxu0
    %481 = vmatprep.mubr.f32.mxu0 0.0
    %482 = vmatmul.mubr.f32.gmra.mxu0 %v410
    %v483 = vpop.f32.mrf.mxu0
    %v484 = vadd.f32 %v405, %v483
    %v485 = vpop.f32.mrf.mxu0
    %486 = vdwg.mxu0
    %v487 = vrot.slane %v318, 2
    %v488 = vrot.slane %v319, 2
    %v489 = vsel %vm230, %v487, %v488
    %v490 = vrot.slane %v320, 2
    %v491 = vsel %vm230, %v488, %v490
    %v492 = vsel %vm61, %v489, 0
    %v494 = vsel %vm61, %v491, 0
    %496 = vmatprep.subr.mxu0 0.0
    %497 = vmatpush1.msra.mxu0 0.0
    %498 = vmatprep.subr.mxu0 0.0
    %499 = vmatpush1.msra.mxu0 0.0
    %500 = vmatprep.subr.mxu0 0.0
    %501 = vmatpush1.msra.mxu0 0.0
    %502 = vmatprep.subr.mxu0 0.0
    %503 = vmatpush1.msra.mxu0 0.0
    %504 = vmatprep.subr.mxu0 0.0
    %505 = vmatpush1.msra.mxu0 0.0
    %506 = vmatprep.subr.mxu0 0.0
    %507 = vmatpush1.msra.mxu0 0.0
    %508 = vmatprep.subr.mxu0 0.0
    %509 = vmatpush1.msra.mxu0 0.0
    %510 = vmatprep.subr.mxu0 0.0
    %511 = vmatpush1.msra.mxu0 %v229
    %512 = vmatprep.subr.mxu0 0.0
    %513 = vmatpush1.msra.mxu0 %v228
    %514 = vmatprep.subr.mxu0 0.0
    %515 = vmatpush1.msra.mxu0 %v227
    %516 = vmatprep.subr.mxu0 0.0
    %517 = vmatpush1.msra.mxu0 %v226
    %518 = vmatprep.subr.mxu0 0.0
    %519 = vmatpush1.msra.mxu0 %v225
    %520 = vmatprep.subr.mxu0 0.0
    %521 = vmatpush1.msra.mxu0 %v224
    %522 = vmatprep.subr.mxu0 0.0
    %523 = vmatpush1.msra.mxu0 %v223
    %524 = vmatprep.subr.mxu0 0.0
    %525 = vmatpush1.msra.mxu0 %v222
    %526 = vmatprep.subr.mxu0 0.0
    %527 = vmatpush1.msra.mxu0 %v221
    %528 = vmatprep.subr.mxu0 0.0
    %529 = vmatpush2.msra.mxu0 0.0
    %530 = vmatprep.subr.mxu0 0.0
    %531 = vmatpush2.msra.mxu0 0.0
    %532 = vmatprep.subr.mxu0 0.0
    %533 = vmatpush2.msra.mxu0 0.0
    %534 = vmatprep.subr.mxu0 0.0
    %535 = vmatpush2.msra.mxu0 0.0
    %536 = vmatprep.subr.mxu0 0.0
    %537 = vmatpush2.msra.mxu0 0.0
    %538 = vmatprep.subr.mxu0 0.0
    %539 = vmatpush2.msra.mxu0 0.0
    %540 = vmatprep.subr.mxu0 0.0
    %541 = vmatpush2.msra.mxu0 0.0
    %542 = vmatprep.subr.mxu0 0.0
    %543 = vmatpush2.msra.mxu0 0.0
    %544 = vmatprep.subr.mxu0 0.0
    %545 = vmatpush2.msra.mxu0 0.0
    %546 = vmatprep.subr.mxu0 0.0
    %547 = vmatpush2.msra.mxu0 0.0
    %548 = vmatprep.subr.mxu0 0.0
    %549 = vmatpush2.msra.mxu0 0.0
    %550 = vmatprep.subr.mxu0 0.0
    %551 = vmatpush2.msra.mxu0 0.0
    %552 = vmatprep.subr.mxu0 0.0
    %553 = vmatpush2.msra.mxu0 0.0
    %554 = vmatprep.subr.mxu0 0.0
    %555 = vmatpush2.msra.mxu0 0.0
    %556 = vmatprep.subr.mxu0 0.0
    %557 = vmatpush2.msra.mxu0 0.0
    %558 = vmatprep.subr.mxu0 0.0
    %559 = vmatpush2.msra.mxu0 0.0
    %560 = vmatprep.mubr.f32.mxu0 0.0
    %561 = vmatmul.mubr.f32.gmra.mxu0 %v492
    %v562 = vpop.f32.mrf.mxu0
    %v563 = vadd.f32 0.0, %v562
    %v564 = vpop.f32.mrf.mxu0
    %565 = vmatprep.mubr.f32.mxu0 0.0
    %566 = vmatmul.mubr.f32.gmra.mxu0 %v494
    %v567 = vpop.f32.mrf.mxu0
    %v568 = vadd.f32 0.0, %v567
    %v569 = vpop.f32.mrf.mxu0
    %570 = vdwg.mxu0
    %v571 = vadd.f32 %v479, %v563
    %v572 = vadd.f32 %v484, %v568
    %v573 = vld [vmem:[%s2] sm:$0x1]
    %v575 = vlaneseq
    %v576 = vshrl.u32 %v575, 7
    %v577 = vsub.s32 0, %v576
    %v578 = vrot.slane %v573, %v577
    %v580 = vadd.f32 %v315, %v578
    %v581 = vadd.f32 %v316, %v578
    %v582 = vadd.f32 %v571, %v578
    %v583 = vadd.f32 %v572, %v578
    %v584 = vmax.f32 %v580, 0.0
    %v585 = vmax.f32 %v581, 0.0
    %v586 = vmax.f32 %v582, 0.0
    %v587 = vmax.f32 %v583, 0.0
    %v588 = vld [vmem:[%s3] sm:$0xff]
    %v589 = vld [vmem:[%s3 + $0x8] sm:$0xff]
    %v590 = vld [vmem:[%s3 + $0x10] sm:$0xff]
    %v591 = vld [vmem:[%s3 + $0x18] sm:$0xff]
    %v592 = vld [vmem:[%s3 + $0x20] sm:$0xff]
    %v593 = vld [vmem:[%s3 + $0x28] sm:$0xff]
    %v594 = vld [vmem:[%s3 + $0x30] sm:$0xff]
    %v595 = vld [vmem:[%s3 + $0x38] sm:$0xff]
    %v596 = vld [vmem:[%s3 + $0x40] sm:$0xff]
    %v597 = vld [vmem:[%s3 + $0x48] sm:$0xff]
    %v598 = vld [vmem:[%s3 + $0x50] sm:$0xff]
    %v599 = vld [vmem:[%s3 + $0x58] sm:$0xff]
    %v600 = vld [vmem:[%s3 + $0x60] sm:$0xff]
    %v601 = vld [vmem:[%s3 + $0x68] sm:$0xff]
    %v602 = vld [vmem:[%s3 + $0x70] sm:$0xff]
    %v603 = vld [vmem:[%s3 + $0x78] sm:$0xff]
    %v604 = vld [vmem:[%s3 + $0x80] sm:$0xff]
    %v605 = vld [vmem:[%s3 + $0x88] sm:$0xff]
    %v606 = vld [vmem:[%s3 + $0x90] sm:$0xff]
    %v607 = vld [vmem:[%s3 + $0x98] sm:$0xff]
    %v608 = vld [vmem:[%s3 + $0xa0] sm:$0xff]
    %v609 = vld [vmem:[%s3 + $0xa8] sm:$0xff]
    %v610 = vld [vmem:[%s3 + $0xb0] sm:$0xff]
    %v611 = vld [vmem:[%s3 + $0xb8] sm:$0xff]
    %v612 = vld [vmem:[%s3 + $0xc0] sm:$0xff]
    %v613 = vld [vmem:[%s3 + $0xc8] sm:$0xff]
    %v614 = vld [vmem:[%s3 + $0xd0] sm:$0xff]
    %v615 = vld [vmem:[%s3 + $0xd8] sm:$0xff]
    %v616 = vld [vmem:[%s3 + $0xe0] sm:$0xff]
    %v617 = vld [vmem:[%s3 + $0xe8] sm:$0xff]
    %v618 = vld [vmem:[%s3 + $0xf0] sm:$0xff]
    %v619 = vld [vmem:[%s3 + $0xf8] sm:$0xff]
    %620 = vmatprep.subr.mxu0 %v619
    %621 = vmatpush1.msra.mxu0 %v618
    %622 = vmatprep.subr.mxu0 %v617
    %623 = vmatpush1.msra.mxu0 %v616
    %624 = vmatprep.subr.mxu0 %v615
    %625 = vmatpush1.msra.mxu0 %v614
    %626 = vmatprep.subr.mxu0 %v613
    %627 = vmatpush1.msra.mxu0 %v612
    %628 = vmatprep.subr.mxu0 %v611
    %629 = vmatpush1.msra.mxu0 %v610
    %630 = vmatprep.subr.mxu0 %v609
    %631 = vmatpush1.msra.mxu0 %v608
    %632 = vmatprep.subr.mxu0 %v607
    %633 = vmatpush1.msra.mxu0 %v606
    %634 = vmatprep.subr.mxu0 %v605
    %635 = vmatpush1.msra.mxu0 %v604
    %636 = vmatprep.subr.mxu0 %v603
    %637 = vmatpush1.msra.mxu0 %v602
    %638 = vmatprep.subr.mxu0 %v601
    %639 = vmatpush1.msra.mxu0 %v600
    %640 = vmatprep.subr.mxu0 %v599
    %641 = vmatpush1.msra.mxu0 %v598
    %642 = vmatprep.subr.mxu0 %v597
    %643 = vmatpush1.msra.mxu0 %v596
    %644 = vmatprep.subr.mxu0 %v595
    %645 = vmatpush1.msra.mxu0 %v594
    %646 = vmatprep.subr.mxu0 %v593
    %647 = vmatpush1.msra.mxu0 %v592
    %648 = vmatprep.subr.mxu0 %v591
    %649 = vmatpush1.msra.mxu0 %v590
    %650 = vmatprep.subr.mxu0 %v589
    %651 = vmatpush1.msra.mxu0 %v588
    %652 = vmatprep.subr.mxu0 0.0
    %653 = vmatpush2.msra.mxu0 0.0
    %654 = vmatprep.subr.mxu0 0.0
    %655 = vmatpush2.msra.mxu0 0.0
    %656 = vmatprep.subr.mxu0 0.0
    %657 = vmatpush2.msra.mxu0 0.0
    %658 = vmatprep.subr.mxu0 0.0
    %659 = vmatpush2.msra.mxu0 0.0
    %660 = vmatprep.subr.mxu0 0.0
    %661 = vmatpush2.msra.mxu0 0.0
    %662 = vmatprep.subr.mxu0 0.0
    %663 = vmatpush2.msra.mxu0 0.0
    %664 = vmatprep.subr.mxu0 0.0
    %665 = vmatpush2.msra.mxu0 0.0
    %666 = vmatprep.subr.mxu0 0.0
    %667 = vmatpush2.msra.mxu0 0.0
    %668 = vmatprep.subr.mxu0 0.0
    %669 = vmatpush2.msra.mxu0 0.0
    %670 = vmatprep.subr.mxu0 0.0
    %671 = vmatpush2.msra.mxu0 0.0
    %672 = vmatprep.subr.mxu0 0.0
    %673 = vmatpush2.msra.mxu0 0.0
    %674 = vmatprep.subr.mxu0 0.0
    %675 = vmatpush2.msra.mxu0 0.0
    %676 = vmatprep.subr.mxu0 0.0
    %677 = vmatpush2.msra.mxu0 0.0
    %678 = vmatprep.subr.mxu0 0.0
    %679 = vmatpush2.msra.mxu0 0.0
    %680 = vmatprep.subr.mxu0 0.0
    %681 = vmatpush2.msra.mxu0 0.0
    %682 = vmatprep.subr.mxu0 0.0
    %683 = vmatpush2.msra.mxu0 0.0
    %684 = vmatprep.mubr.f32.mxu0 0.0
    %685 = vmatmul.mubr.f32.gmra.mxu0 %v584
    %v686 = vpop.f32.mrf.mxu0
    %v687 = vadd.f32 0.0, %v686
    %v688 = vpop.f32.mrf.mxu0
    %v689 = vadd.f32 0.0, %v688
    %690 = vmatprep.mubr.f32.mxu0 0.0
    %691 = vmatmul.mubr.f32.gmra.mxu0 %v585
    %v692 = vpop.f32.mrf.mxu0
    %v693 = vadd.f32 0.0, %v692
    %v694 = vpop.f32.mrf.mxu0
    %v695 = vadd.f32 0.0, %v694
    %696 = vmatprep.mubr.f32.mxu0 0.0
    %697 = vmatmul.mubr.f32.gmra.mxu0 %v586
    %v698 = vpop.f32.mrf.mxu0
    %v699 = vadd.f32 0.0, %v698
    %v700 = vpop.f32.mrf.mxu0
    %v701 = vadd.f32 0.0, %v700
    %702 = vmatprep.mubr.f32.mxu0 0.0
    %703 = vmatmul.mubr.f32.gmra.mxu0 %v587
    %v704 = vpop.f32.mrf.mxu0
    %v705 = vadd.f32 0.0, %v704
    %v706 = vpop.f32.mrf.mxu0
    %v707 = vadd.f32 0.0, %v706
    %708 = vdwg.mxu0
    %v709 = vld [vmem:[%s4] sm:$0xff]
    %v710 = vld [vmem:[%s4 + $0x8] sm:$0xff]
    %v711 = vld [vmem:[%s4 + $0x10] sm:$0xff]
    %v712 = vld [vmem:[%s4 + $0x18] sm:$0xff]
    %v713 = vld [vmem:[%s4 + $0x20] sm:$0xff]
    %v714 = vld [vmem:[%s4 + $0x28] sm:$0xff]
    %v715 = vld [vmem:[%s4 + $0x30] sm:$0xff]
    %v716 = vld [vmem:[%s4 + $0x38] sm:$0xff]
    %v717 = vmul.f32 %v687, %v709
    %v718 = vmul.f32 %v689, %v710
    %v719 = vmul.f32 %v693, %v711
    %v720 = vmul.f32 %v695, %v712
    %v721 = vmul.f32 %v699, %v713
    %v722 = vmul.f32 %v701, %v714
    %v723 = vmul.f32 %v705, %v715
    %v724 = vmul.f32 %v707, %v716
    %v725 = vld [vmem:[%s5] sm:$0xff]
    %v726 = vld [vmem:[%s5 + $0x8] sm:$0xff]
    %v727 = vld [vmem:[%s5 + $0x10] sm:$0xff]
    %v728 = vld [vmem:[%s5 + $0x18] sm:$0xff]
    %v729 = vld [vmem:[%s5 + $0x20] sm:$0xff]
    %v730 = vld [vmem:[%s5 + $0x28] sm:$0xff]
    %v731 = vld [vmem:[%s5 + $0x30] sm:$0xff]
    %v732 = vld [vmem:[%s5 + $0x38] sm:$0xff]
    %v733 = vld [vmem:[%s5 + $0x40] sm:$0xff]
    %v734 = vld [vmem:[%s5 + $0x48] sm:$0xff]
    %v735 = vld [vmem:[%s5 + $0x50] sm:$0xff]
    %v736 = vld [vmem:[%s5 + $0x58] sm:$0xff]
    %v737 = vld [vmem:[%s5 + $0x60] sm:$0xff]
    %v738 = vld [vmem:[%s5 + $0x68] sm:$0xff]
    %v739 = vld [vmem:[%s5 + $0x70] sm:$0xff]
    %v740 = vld [vmem:[%s5 + $0x78] sm:$0xff]
    %v741 = vld [vmem:[%s5 + $0x80] sm:$0xff]
    %v742 = vld [vmem:[%s5 + $0x88] sm:$0xff]
    %v743 = vld [vmem:[%s5 + $0x90] sm:$0xff]
    %v744 = vld [vmem:[%s5 + $0x98] sm:$0xff]
    %vm745 = vcmask 261120
    %v747 = vsel %vm745, %v718, 0
    %v750 = vsel %vm745, %v720, 0
    %v753 = vsel %vm745, %v722, 0
    %v756 = vsel %vm745, %v724, 0
    %758 = vmatprep.subr.mxu0 0.0
    %759 = vmatpush1.msra.mxu0 %v740
    %760 = vmatprep.subr.mxu0 0.0
    %761 = vmatpush1.msra.mxu0 %v739
    %762 = vmatprep.subr.mxu0 0.0
    %763 = vmatpush1.msra.mxu0 %v738
    %764 = vmatprep.subr.mxu0 0.0
    %765 = vmatpush1.msra.mxu0 %v737
    %766 = vmatprep.subr.mxu0 0.0
    %767 = vmatpush1.msra.mxu0 %v736
    %768 = vmatprep.subr.mxu0 0.0
    %769 = vmatpush1.msra.mxu0 %v735
    %770 = vmatprep.subr.mxu0 0.0
    %771 = vmatpush1.msra.mxu0 %v734
    %772 = vmatprep.subr.mxu0 0.0
    %773 = vmatpush1.msra.mxu0 %v733
    %774 = vmatprep.subr.mxu0 0.0
    %775 = vmatpush1.msra.mxu0 %v732
    %776 = vmatprep.subr.mxu0 0.0
    %777 = vmatpush1.msra.mxu0 %v731
    %778 = vmatprep.subr.mxu0 0.0
    %779 = vmatpush1.msra.mxu0 %v730
    %780 = vmatprep.subr.mxu0 0.0
    %781 = vmatpush1.msra.mxu0 %v729
    %782 = vmatprep.subr.mxu0 0.0
    %783 = vmatpush1.msra.mxu0 %v728
    %784 = vmatprep.subr.mxu0 0.0
    %785 = vmatpush1.msra.mxu0 %v727
    %786 = vmatprep.subr.mxu0 0.0
    %787 = vmatpush1.msra.mxu0 %v726
    %788 = vmatprep.subr.mxu0 0.0
    %789 = vmatpush1.msra.mxu0 %v725
    %790 = vmatprep.subr.mxu0 0.0
    %791 = vmatpush2.msra.mxu0 0.0
    %792 = vmatprep.subr.mxu0 0.0
    %793 = vmatpush2.msra.mxu0 0.0
    %794 = vmatprep.subr.mxu0 0.0
    %795 = vmatpush2.msra.mxu0 0.0
    %796 = vmatprep.subr.mxu0 0.0
    %797 = vmatpush2.msra.mxu0 0.0
    %798 = vmatprep.subr.mxu0 0.0
    %799 = vmatpush2.msra.mxu0 0.0
    %800 = vmatprep.subr.mxu0 0.0
    %801 = vmatpush2.msra.mxu0 0.0
    %802 = vmatprep.subr.mxu0 0.0
    %803 = vmatpush2.msra.mxu0 0.0
    %804 = vmatprep.subr.mxu0 0.0
    %805 = vmatpush2.msra.mxu0 0.0
    %806 = vmatprep.subr.mxu0 0.0
    %807 = vmatpush2.msra.mxu0 0.0
    %808 = vmatprep.subr.mxu0 0.0
    %809 = vmatpush2.msra.mxu0 0.0
    %810 = vmatprep.subr.mxu0 0.0
    %811 = vmatpush2.msra.mxu0 0.0
    %812 = vmatprep.subr.mxu0 0.0
    %813 = vmatpush2.msra.mxu0 0.0
    %814 = vmatprep.subr.mxu0 0.0
    %815 = vmatpush2.msra.mxu0 %v744
    %816 = vmatprep.subr.mxu0 0.0
    %817 = vmatpush2.msra.mxu0 %v743
    %818 = vmatprep.subr.mxu0 0.0
    %819 = vmatpush2.msra.mxu0 %v742
    %820 = vmatprep.subr.mxu0 0.0
    %821 = vmatpush2.msra.mxu0 %v741
    %822 = vmatprep.mubr.f32.mxu0 %v747
    %823 = vmatmul.mubr.f32.gmra.mxu0 %v717
    %v824 = vpop.f32.mrf.mxu0
    %v825 = vadd.f32 0.0, %v824
    %v826 = vpop.f32.mrf.mxu0
    %827 = vmatprep.mubr.f32.mxu0 %v750
    %828 = vmatmul.mubr.f32.gmra.mxu0 %v719
    %v829 = vpop.f32.mrf.mxu0
    %v830 = vadd.f32 0.0, %v829
    %v831 = vpop.f32.mrf.mxu0
    %832 = vmatprep.mubr.f32.mxu0 %v753
    %833 = vmatmul.mubr.f32.gmra.mxu0 %v721
    %v834 = vpop.f32.mrf.mxu0
    %v835 = vadd.f32 0.0, %v834
    %v836 = vpop.f32.mrf.mxu0
    %837 = vmatprep.mubr.f32.mxu0 %v756
    %838 = vmatmul.mubr.f32.gmra.mxu0 %v723
    %v839 = vpop.f32.mrf.mxu0
    %v840 = vadd.f32 0.0, %v839
    %v841 = vpop.f32.mrf.mxu0
    %842 = vdwg.mxu0
    %v843 = vld [vmem:[%s6] sm:$0x3]
    %v844 = vld [vmem:[%s7] sm:$0x1]
    %v846 = vlaneseq
    %v847 = vshrl.u32 %v846, 7
    %v848 = vsub.s32 0, %v847
    %v849 = vrot.slane %v844, %v848
    %v852 = vsel %vm745, %v843, 0
    %854 = vmatprep.subr.mxu0 0.0
    %855 = vmatpush1.msra.mxu0 0.0
    %856 = vmatprep.subr.mxu0 0.0
    %857 = vmatpush1.msra.mxu0 0.0
    %858 = vmatprep.subr.mxu0 0.0
    %859 = vmatpush1.msra.mxu0 0.0
    %860 = vmatprep.subr.mxu0 0.0
    %861 = vmatpush1.msra.mxu0 0.0
    %862 = vmatprep.subr.mxu0 0.0
    %863 = vmatpush1.msra.mxu0 0.0
    %864 = vmatprep.subr.mxu0 0.0
    %865 = vmatpush1.msra.mxu0 0.0
    %866 = vmatprep.subr.mxu0 0.0
    %867 = vmatpush1.msra.mxu0 0.0
    %868 = vmatprep.subr.mxu0 0.0
    %869 = vmatpush1.msra.mxu0 0.0
    %870 = vmatprep.subr.mxu0 0.0
    %871 = vmatpush1.msra.mxu0 0.0
    %872 = vmatprep.subr.mxu0 0.0
    %873 = vmatpush1.msra.mxu0 0.0
    %874 = vmatprep.subr.mxu0 0.0
    %875 = vmatpush1.msra.mxu0 0.0
    %876 = vmatprep.subr.mxu0 0.0
    %877 = vmatpush1.msra.mxu0 0.0
    %878 = vmatprep.subr.mxu0 0.0
    %879 = vmatpush1.msra.mxu0 %v840
    %880 = vmatprep.subr.mxu0 0.0
    %881 = vmatpush1.msra.mxu0 %v835
    %882 = vmatprep.subr.mxu0 0.0
    %883 = vmatpush1.msra.mxu0 %v830
    %884 = vmatprep.subr.mxu0 0.0
    %885 = vmatpush1.msra.mxu0 %v825
    %886 = vmatprep.subr.mxu0 0.0
    %887 = vmatpush2.msra.mxu0 0.0
    %888 = vmatprep.subr.mxu0 0.0
    %889 = vmatpush2.msra.mxu0 0.0
    %890 = vmatprep.subr.mxu0 0.0
    %891 = vmatpush2.msra.mxu0 0.0
    %892 = vmatprep.subr.mxu0 0.0
    %893 = vmatpush2.msra.mxu0 0.0
    %894 = vmatprep.subr.mxu0 0.0
    %895 = vmatpush2.msra.mxu0 0.0
    %896 = vmatprep.subr.mxu0 0.0
    %897 = vmatpush2.msra.mxu0 0.0
    %898 = vmatprep.subr.mxu0 0.0
    %899 = vmatpush2.msra.mxu0 0.0
    %900 = vmatprep.subr.mxu0 0.0
    %901 = vmatpush2.msra.mxu0 0.0
    %902 = vmatprep.subr.mxu0 0.0
    %903 = vmatpush2.msra.mxu0 0.0
    %904 = vmatprep.subr.mxu0 0.0
    %905 = vmatpush2.msra.mxu0 0.0
    %906 = vmatprep.subr.mxu0 0.0
    %907 = vmatpush2.msra.mxu0 0.0
    %908 = vmatprep.subr.mxu0 0.0
    %909 = vmatpush2.msra.mxu0 0.0
    %910 = vmatprep.subr.mxu0 0.0
    %911 = vmatpush2.msra.mxu0 0.0
    %912 = vmatprep.subr.mxu0 0.0
    %913 = vmatpush2.msra.mxu0 0.0
    %914 = vmatprep.subr.mxu0 0.0
    %915 = vmatpush2.msra.mxu0 0.0
    %916 = vmatprep.subr.mxu0 0.0
    %917 = vmatpush2.msra.mxu0 0.0
    %918 = vmatprep.mubr.f32.mxu0 0.0
    %919 = vmatmul.mubr.f32.gmra.mxu0 %v852
    %v920 = vpop.f32.mrf.mxu0
    %v921 = vadd.f32 %v849, %v920
    %v922 = vpop.f32.mrf.mxu0
    %923 = vdwg.mxu0
    %vm924 = vcmask 74752
    %925 = vst.msk [vmem:[#allocation2] sm:$0x3] %vm924, %v921
    // Predicated region
    $region34: #{tpu_custom_call.1} parent=1 // pred_check
      _
    $region35: #{tpu_custom_call.1} parent=1 // pred_check_branch
      %927 = sbr.rel (0) target = $region37
    $region36: #{tpu_custom_call.1} parent=1 // pred_region
      %s929 = ssub.s32 32, 32
      %930 = vsyncadd [#allocation3], %s929
      %s932 = sshll.u32 [#allocation2], 4
      %s933 = int_to_ptr.vmem [resolvable:$true] %s932
      %935 = dma.vmem_to_hbm [thread:$0]  %s933, 32, %s8, [#allocation3]
    $region37: #{tpu_custom_call.1} parent=1 // pred_fallthru
      _
    // Predicated region
    $region38: #{tpu_custom_call.1} parent=1 // pred_check
      _
    $region39: #{tpu_custom_call.1} parent=1 // pred_check_branch
      %937 = sbr.rel (0) target = $region41
    $region40: #{tpu_custom_call.1} parent=1 // pred_region
      %938 = dma.done [#allocation3], 32
    $region41: #{tpu_custom_call.1} parent=1 // pred_fallthru
      _
    %939 = vsyncpa [#allocation3], 1

</llo_original>
